<compile_context>
chip_gen: v5e
topology: v5e:2x2
jax: 0.10.0
libtpu: 0.0.40
codegen_flags: <defaults>
</compile_context>

<pallas_src>
import math

import jax
import jax.numpy as jnp
from jax.experimental import pallas as pl
from jax.experimental.pallas import tpu as pltpu


def _round_up(x, m):
    return ((x + m - 1) // m) * m


# ----------------------------------------------------------------------------
# Fused kernel factory: grid = (row_tiles [parallel], kv_tiles [reduction])
# ----------------------------------------------------------------------------
def _make_kernel(ones_col, tile_k, resident_kv):
    def kernel(adj_ref, fkv_ref, fq_ref, w1_ref, w2_ref, o_ref, s_acc):
        # adj_ref: (TI, TK)         bf16 adjacency tile (rows=i-tile, cols=k-tile)
        # fkv_ref: (TK, Fp)/(Np,Fp) augmented features (kv side)
        # fq_ref:  (TI, Fp)         augmented features (query side, const over k)
        # w1_ref:  (Fp, Fout)       self  part of proj.weight (transposed, +bias)
        # w2_ref:  (Fp, Fout)       neigh part of proj.weight (transposed)
        # o_ref:   (TI, Fout)       lane-dense output slab for this row tile
        # s_acc:   (TI, Fp) f32     running adj @ x_aug; col `ones_col` = degree
        k = pl.program_id(1)

        @pl.when(k == 0)
        def _():
            s_acc[...] = jnp.zeros_like(s_acc)

        adj = adj_ref[...].astype(jnp.float32)          # bf16 -> f32 (exact 0/1)
        if resident_kv:
            start = pl.multiple_of(k * tile_k, tile_k)
            fkv = fkv_ref[pl.ds(start, tile_k), :]
        else:
            fkv = fkv_ref[...]
        s_acc[...] += jnp.dot(adj, fkv, preferred_element_type=jnp.float32)

        @pl.when(k == pl.num_programs(1) - 1)
        def _():
            s = s_acc[...]
            deg = s[:, ones_col:ones_col + 1]            # degree via MXU, free
            inv = pl.reciprocal(deg + 1.0, approx=True)  # EUP slot, ~free
            neigh = s * inv
            out = jnp.dot(fq_ref[...], w1_ref[...],
                          preferred_element_type=jnp.float32)
            out = out + jnp.dot(neigh, w2_ref[...],
                                preferred_element_type=jnp.float32)
            o_ref[...] = out.astype(o_ref.dtype)

    return kernel


# ----------------------------------------------------------------------------
# Wrapper
# ----------------------------------------------------------------------------
def sage_conv(features, adj, weight, bias=None, *,
              tile_i=None, tile_k=None,
              adj_dtype=jnp.bfloat16,
              resident_features_budget_bytes=16 * 1024 * 1024):
    """SageConv forward (dense 2-D adjacency branch of the PyTorch module).

    features: (N, F_in) float32
    adj:      (N, N) dense adjacency.  Streamed as `adj_dtype` (bf16 default,
              exact for unweighted 0/1 adjacency; use jnp.float32 if weighted).
    weight:   (Fout, 2*F_in)  -- PyTorch proj.weight layout
    bias:     (Fout,) or None (module default: bias=False)
    """
    N, F_in = features.shape
    Fout = weight.shape[0]
    assert weight.shape[1] == 2 * F_in

    # ----- tiling: decoupled row (TI) / reduction (TK) tiles -----------------
    Np0 = _round_up(max(N, 1), 128)

    def _pick(cands, cap):
        for c in cands:
            if c <= cap:
                return c
        return cap

    if tile_i is None:
        # Keep >= 2 row tiles when possible so the "parallel" axis feeds both
        # TensorCores on v7x megacore.
        cap_i = Np0 // 2 if Np0 >= 256 else Np0
        TI = _pick((512, 256, 128), cap_i)
    else:
        TI = int(tile_i)
    if tile_k is None:
        TK = _pick((1024, 512, 256, 128), Np0)
    else:
        TK = int(tile_k)
    Np = _round_up(N, math.lcm(TI, TK))
    n_i, n_k = Np // TI, Np // TK

    # ----- augmented features: [x | 1 | 0-pad]  (degree comes out of the MXU)
    F_aug = F_in + 1
    F_pad = _round_up(F_aug, 128)
    x = features.astype(jnp.float32)
    x_aug = jnp.concatenate([x, jnp.ones((N, 1), jnp.float32)], axis=1)
    x_aug = jnp.pad(x_aug, ((0, Np - N), (0, F_pad - F_aug)))

    # ----- adjacency: zero-pad + narrow dtype for the dominant HBM stream ----
    adj_p = jnp.pad(adj.astype(jnp.float32), ((0, Np - N), (0, Np - N)))
    adj_p = adj_p.astype(adj_dtype)

    # ----- weights: split, transpose, zero-pad; fold bias into ones column ---
    w = weight.astype(jnp.float32)
    w1_pad = jnp.zeros((F_pad, Fout), jnp.float32).at[:F_in].set(w[:, :F_in].T)
    if bias is not None:
        w1_pad = w1_pad.at[F_in].set(jnp.asarray(bias, jnp.float32).reshape(Fout))
    w2_pad = jnp.zeros((F_pad, Fout), jnp.float32).at[:F_in].set(w[:, F_in:].T)

    # ----- resident-features decision (kills the fkv re-streaming over i) ----
    # (Constant-index full-array block: copied once, reused for every grid
    #  step.  Double-buffered by default; pipeline_mode=pl.Buffered(1) would
    #  halve the VMEM cost, left as a tuning knob.)
    fkv_resident = 2 * Np * F_pad * 4 <= resident_features_budget_bytes
    if fkv_resident:
        fkv_spec = pl.BlockSpec((Np, F_pad), lambda i, k: (0, 0))
        fkv_bytes_hbm = Np * F_pad * 4
        fkv_vmem = 2 * Np * F_pad * 4
    else:
        fkv_spec = pl.BlockSpec((TK, F_pad), lambda i, k: (k, 0))
        fkv_bytes_hbm = n_i * Np * F_pad * 4
        fkv_vmem = 2 * TK * F_pad * 4

    # ----- VMEM limit: generation-aware (v7x only has 64 MiB per TC) ---------
    adj_esize = jnp.dtype(adj_dtype).itemsize
    vmem_est = (2 * TI * TK * adj_esize        # adj (double-buffered)
                + fkv_vmem                     # kv features
                + 2 * TI * F_pad * 4           # fq
                + 2 * 2 * F_pad * Fout * 4     # W1, W2
                + 2 * TI * Fout * 4            # out
                + TI * F_pad * 4)              # s_acc scratch
    try:
        vmem_cap = int(pltpu.get_tpu_info().vmem_capacity_bytes)
    except Exception:
        vmem_cap = 64 * 1024 * 1024
    vmem_limit = min(max(32 * 1024 * 1024, int(vmem_est * 1.5) + (4 << 20)),
                     max(vmem_cap - (16 << 20), 16 << 20))

    cost = pl.CostEstimate(
        flops=2 * Np * Np * F_pad + 4 * Np * F_pad * Fout,
        transcendentals=Np,                       # approx reciprocal of degree
        bytes_accessed=(Np * Np * adj_esize       # adjacency (bf16)
                        + fkv_bytes_hbm           # kv features (incl. re-reads)
                        + Np * F_pad * 4          # query features
                        + 2 * F_pad * Fout * 4    # weights
                        + Np * Fout * 4),         # output
    )

    kernel = _make_kernel(ones_col=F_in, tile_k=TK, resident_kv=fkv_resident)

    out = pl.pallas_call(
        kernel,
        out_shape=jax.ShapeDtypeStruct((Np, Fout), jnp.float32),
        grid_spec=pltpu.PrefetchScalarGridSpec(
            num_scalar_prefetch=0,
            grid=(n_i, n_k),
            in_specs=[
                pl.BlockSpec((TI, TK), lambda i, k: (i, k)),        # adj tile
                fkv_spec,                                           # x_aug (kv)
                pl.BlockSpec((TI, F_pad), lambda i, k: (i, 0)),     # x_aug (query)
                pl.BlockSpec((F_pad, Fout), lambda i, k: (0, 0)),   # W1.T (+bias)
                pl.BlockSpec((F_pad, Fout), lambda i, k: (0, 0)),   # W2.T
            ],
            out_specs=pl.BlockSpec((TI, Fout), lambda i, k: (i, 0)),
            scratch_shapes=[pltpu.VMEM((TI, F_pad), jnp.float32)],  # adj@x_aug
        ),
        compiler_params=pltpu.CompilerParams(
            dimension_semantics=("parallel", "arbitrary"),
            vmem_limit_bytes=int(vmem_limit),
        ),
        cost_estimate=cost,
    )(adj_p, x_aug, x_aug, w1_pad, w2_pad)

    return out[:N]


# ----------------------------------------------------------------------------
# Pure-JAX reference (mirrors the PyTorch forward, dense 2-D branch)
# ----------------------------------------------------------------------------
def reference_forward(features, adj, weight, bias=None):
    deg = jnp.sum(adj, axis=1, keepdims=True)
    neigh = jnp.dot(adj, features) / (deg + 1.0)
    data = jnp.concatenate([features, neigh], axis=-1)
    out = jnp.dot(data, weight.T)
    if bias is not None:
        out = out + bias
    return out


if __name__ == "__main__":
    # Small shapes consistent with the module: N nodes, in_features, out_features.
    N, in_features, out_features = 256, 64, 128

    key = jax.random.PRNGKey(0)
    k_x, k_adj, k_w = jax.random.split(key, 3)

    features = jax.random.normal(k_x, (N, in_features), jnp.float32)
    adj = (jax.random.uniform(k_adj, (N, N)) > 0.9).astype(jnp.float32)
    adj = jnp.clip(adj + jnp.eye(N, dtype=jnp.float32), 0.0, 1.0)  # self-loops

    # reset_parameters(): nn.init.normal_(proj.weight); module default bias=False.
    weight = jax.random.normal(k_w, (out_features, 2 * in_features), jnp.float32)

    out = sage_conv(features, adj, weight, bias=None)
    out = jax.block_until_ready(out)

    ref = reference_forward(features, adj, weight)
    assert out.shape == (N, out_features), out.shape
    max_diff = float(jnp.max(jnp.abs(out - ref)))
    # Tolerance covers MXU default f32 matmul precision + approx EUP reciprocal.
    assert jnp.allclose(out, ref, rtol=1e-2, atol=1e-2), f"max abs diff {max_diff}"

    print("KERNEL_OK")
</pallas_src>

<mosaic_0001>
module attributes {stable_mosaic.version = 11 : i64} {
  func.func @kernel(%arg0: i32, %arg1: i32, %arg2: memref<128x256xbf16, #tpu.memory_space<vmem>>, %arg3: memref<256x128xf32, #tpu.memory_space<vmem>>, %arg4: memref<128x128xf32, #tpu.memory_space<vmem>>, %arg5: memref<128x128xf32, #tpu.memory_space<vmem>>, %arg6: memref<128x128xf32, #tpu.memory_space<vmem>>, %arg7: memref<128x128xf32, #tpu.memory_space<vmem>>, %arg8: memref<128x128xf32, #tpu.memory_space<vmem>>) attributes {dimension_semantics = [#tpu.dimension_semantics<parallel>, #tpu.dimension_semantics<arbitrary>], iteration_bounds = array<i64: 2, 1>, scalar_prefetch = 0 : i64, scratch_operands = 1 : i64, tpu.core_type = #tpu.core_type<tc>, window_params = [{transform_indices = @transform_0, window_bounds = array<i64: 128, 256>}, {pipeline_mode = #tpu.pipeline_mode<synchronous>, transform_indices = @transform_1, window_bounds = array<i64: 256, 128>}, {transform_indices = @transform_2, window_bounds = array<i64: 128, 128>}, {pipeline_mode = #tpu.pipeline_mode<synchronous>, transform_indices = @transform_3, window_bounds = array<i64: 128, 128>}, {pipeline_mode = #tpu.pipeline_mode<synchronous>, transform_indices = @transform_4, window_bounds = array<i64: 128, 128>}, {transform_indices = @transform_5, window_bounds = array<i64: 128, 128>}]} {
    %c0_i32 = arith.constant 0 : i32
    %0 = arith.cmpi eq, %arg1, %c0_i32 : i32
    %1 = arith.extui %0 : i1 to i32
    %c0_i32_0 = arith.constant 0 : i32
    %2 = arith.cmpi ne, %1, %c0_i32_0 : i32
    scf.if %2 {
      %cst_9 = arith.constant 0.000000e+00 : f32
      %16 = vector.broadcast %cst_9 : f32 to vector<128x128xf32>
      %c0_10 = arith.constant 0 : index
      %c0_11 = arith.constant 0 : index
      %17 = vector.load %arg8[%c0_10, %c0_11] : memref<128x128xf32, #tpu.memory_space<vmem>>, vector<128x128xf32>
      tpu.vector_store %arg8[%c0_10, %c0_11], %16 {strides = array<i32>} : memref<128x128xf32, #tpu.memory_space<vmem>>, vector<128x128xf32>,
    } else {
    }
    %c0 = arith.constant 0 : index
    %c0_1 = arith.constant 0 : index
    %3 = vector.load %arg2[%c0, %c0_1] : memref<128x256xbf16, #tpu.memory_space<vmem>>, vector<128x256xbf16>
    %4 = arith.extf %3 : vector<128x256xbf16> to vector<128x256xf32>
    %c256_i32 = arith.constant 256 : i32
    %5 = arith.muli %arg1, %c256_i32 : i32
    %6 = tpu.assume_multiple %5, 256 : i32
    %7 = arith.index_cast %6 : i32 to index
    %c0_2 = arith.constant 0 : index
    %8 = vector.load %arg3[%7, %c0_2] : memref<256x128xf32, #tpu.memory_space<vmem>>, vector<256x128xf32>
    %c0_3 = arith.constant 0 : index
    %c0_4 = arith.constant 0 : index
    %9 = vector.load %arg8[%c0_3, %c0_4] : memref<128x128xf32, #tpu.memory_space<vmem>>, vector<128x128xf32>
    %cst = arith.constant dense<0.000000e+00> : vector<128x128xf32>
    %10 = tpu.matmul %4, %8, %cst {dimension_numbers = #tpu.dot_dimension_numbers<[1], [0], [0], [1], [0, 0, 1, 1], [], []>} : vector<128x256xf32>, vector<256x128xf32>, vector<128x128xf32> -> vector<128x128xf32>
    %11 = arith.addf %9, %10 : vector<128x128xf32>
    %c0_5 = arith.constant 0 : index
    %c0_6 = arith.constant 0 : index
    %12 = vector.load %arg8[%c0_5, %c0_6] : memref<128x128xf32, #tpu.memory_space<vmem>>, vector<128x128xf32>
    tpu.vector_store %arg8[%c0_5, %c0_6], %11 {strides = array<i32>} : memref<128x128xf32, #tpu.memory_space<vmem>>, vector<128x128xf32>,
    %c0_i32_7 = arith.constant 0 : i32
    %13 = arith.cmpi eq, %arg1, %c0_i32_7 : i32
    %14 = arith.extui %13 : i1 to i32
    %c0_i32_8 = arith.constant 0 : i32
    %15 = arith.cmpi ne, %14, %c0_i32_8 : i32
    scf.if %15 {
      %c0_9 = arith.constant 0 : index
      %c0_10 = arith.constant 0 : index
      %16 = vector.load %arg8[%c0_9, %c0_10] : memref<128x128xf32, #tpu.memory_space<vmem>>, vector<128x128xf32>
      %17 = vector.extract_strided_slice %16 {offsets = [0, 64], sizes = [128, 1], strides = [1, 1]} : vector<128x128xf32> to vector<128x1xf32>
      %cst_11 = arith.constant 1.000000e+00 : f32
      %18 = vector.broadcast %cst_11 : f32 to vector<128x1xf32>
      %19 = arith.addf %17, %18 : vector<128x1xf32>
      %20 = tpu.reciprocal %19 {approx = true} : vector<128x1xf32> -> vector<128x1xf32>
      %21 = vector.broadcast %20 : vector<128x1xf32> to vector<128x128xf32>
      %22 = arith.mulf %16, %21 : vector<128x128xf32>
      %c0_12 = arith.constant 0 : index
      %c0_13 = arith.constant 0 : index
      %23 = vector.load %arg4[%c0_12, %c0_13] : memref<128x128xf32, #tpu.memory_space<vmem>>, vector<128x128xf32>
      %c0_14 = arith.constant 0 : index
      %c0_15 = arith.constant 0 : index
      %24 = vector.load %arg5[%c0_14, %c0_15] : memref<128x128xf32, #tpu.memory_space<vmem>>, vector<128x128xf32>
      %cst_16 = arith.constant dense<0.000000e+00> : vector<128x128xf32>
      %25 = tpu.matmul %23, %24, %cst_16 {dimension_numbers = #tpu.dot_dimension_numbers<[1], [0], [0], [1], [0, 0, 1, 1], [], []>} : vector<128x128xf32>, vector<128x128xf32>, vector<128x128xf32> -> vector<128x128xf32>
      %c0_17 = arith.constant 0 : index
      %c0_18 = arith.constant 0 : index
      %26 = vector.load %arg6[%c0_17, %c0_18] : memref<128x128xf32, #tpu.memory_space<vmem>>, vector<128x128xf32>
      %cst_19 = arith.constant dense<0.000000e+00> : vector<128x128xf32>
      %27 = tpu.matmul %22, %26, %cst_19 {dimension_numbers = #tpu.dot_dimension_numbers<[1], [0], [0], [1], [0, 0, 1, 1], [], []>} : vector<128x128xf32>, vector<128x128xf32>, vector<128x128xf32> -> vector<128x128xf32>
      %28 = arith.addf %25, %27 : vector<128x128xf32>
      %c0_20 = arith.constant 0 : index
      %c0_21 = arith.constant 0 : index
      %29 = vector.load %arg7[%c0_20, %c0_21] : memref<128x128xf32, #tpu.memory_space<vmem>>, vector<128x128xf32>
      tpu.vector_store %arg7[%c0_20, %c0_21], %28 {strides = array<i32>} : memref<128x128xf32, #tpu.memory_space<vmem>>, vector<128x128xf32>,
    } else {
    }
    return
  }
  func.func @transform_0(%arg0: i32, %arg1: i32) -> (i32, i32) {
    %c0_i32 = arith.constant 0 : i32
    return %arg0, %arg1 : i32, i32
  }
  func.func @transform_1(%arg0: i32, %arg1: i32) -> (i32, i32) {
    %c0_i32 = arith.constant 0 : i32
    %c0_i32_0 = arith.constant 0 : i32
    %c0_i32_1 = arith.constant 0 : i32
    return %c0_i32, %c0_i32_0 : i32, i32
  }
  func.func @transform_2(%arg0: i32, %arg1: i32) -> (i32, i32) {
    %c0_i32 = arith.constant 0 : i32
    %c0_i32_0 = arith.constant 0 : i32
    return %arg0, %c0_i32 : i32, i32
  }
  func.func @transform_3(%arg0: i32, %arg1: i32) -> (i32, i32) {
    %c0_i32 = arith.constant 0 : i32
    %c0_i32_0 = arith.constant 0 : i32
    %c0_i32_1 = arith.constant 0 : i32
    return %c0_i32, %c0_i32_0 : i32, i32
  }
  func.func @transform_4(%arg0: i32, %arg1: i32) -> (i32, i32) {
    %c0_i32 = arith.constant 0 : i32
    %c0_i32_0 = arith.constant 0 : i32
    %c0_i32_1 = arith.constant 0 : i32
    return %c0_i32, %c0_i32_0 : i32, i32
  }
  func.func @transform_5(%arg0: i32, %arg1: i32) -> (i32, i32) {
    %c0_i32 = arith.constant 0 : i32
    %c0_i32_0 = arith.constant 0 : i32
    return %arg0, %c0_i32 : i32, i32
  }
}

</mosaic_0001>

<llo_original>
// kernel: tpu_custom_call.1
$region0: #{tpu_custom_call.1}
  #allocation0 [shape = 'u32[]', space=smem, size = 0x4, offset = 0x4, fixed_abs, tag = 'smem constant byte address 0x4 - core index']
  #allocation1 [shape = 'u32[72,128]{1,0:T(1,128)}', space=vmem, size = 0x9000, scoped, tag = 'internal scratch']
  #allocation2 [shape = 'f32[128,128]{1,0:T(8,128)}', space=vmem, size = 0x10000, scoped, tag = 'scratch operand']
  %s0 = inlined_call_operand.hbm [shape: bf16[256,256], index: 0, kind: input, shape index: {}]
  %s1 = inlined_call_operand.hbm [shape: f32[256,128], index: 1, kind: input, shape index: {}]
  %s2 = inlined_call_operand.hbm [shape: f32[256,128], index: 2, kind: input, shape index: {}]
  %s3 = inlined_call_operand.hbm [shape: f32[128,128], index: 3, kind: input, shape index: {}]
  %s4 = inlined_call_operand.hbm [shape: f32[128,128], index: 4, kind: input, shape index: {}]
  %s5 = inlined_call_operand.hbm [shape: f32[256,128], index: 5, kind: output, shape index: {}]
  %s6 = sld [smem:[#allocation0]]
  $region81: #{tpu_custom_call.1} parent=0
    _
  %s8 = ssub.s32 1, %s6
  %s9 = scalar_select 0, %s8, %s6
  $region1: #{tpu_custom_call.1} parent=0
    #allocation3 [shape = 'u8[131072]{0}', space=vmem, size = 0x20000, scoped, tag = 'input window, operand 0']
    #allocation4 [shape = 's32[2]{0}', space=sflag, size = 0x8, scoped, tag = 'scoped memory for tpu_custom_call.1']
    #allocation5 [shape = 's32[2]{0}', space=sflag, size = 0x8, scoped, tag = 'scoped memory for tpu_custom_call.1']
    #allocation6 [shape = 'u8[131072]{0}', space=vmem, size = 0x20000, scoped, tag = 'input window, operand 1, single buffered']
    #allocation7 [shape = 's32[1]{0}', space=sflag, size = 0x4, scoped, tag = 'scoped memory for tpu_custom_call.1']
    #allocation8 [shape = 'u8[131072]{0}', space=vmem, size = 0x20000, scoped, tag = 'input window, operand 2']
    #allocation9 [shape = 'u8[65536]{0}', space=vmem, size = 0x10000, scoped, tag = 'input window, operand 3, single buffered']
    #allocation10 [shape = 'u8[65536]{0}', space=vmem, size = 0x10000, scoped, tag = 'input window, operand 4, single buffered']
    #allocation11 [shape = 's32[1]{0}', space=sflag, size = 0x4, scoped, tag = 'scoped memory for tpu_custom_call.1']
    #allocation12 [shape = 'u8[131072]{0}', space=vmem, size = 0x20000, scoped, tag = 'output window, operand 0']
    %10 = vsyncpa [#allocation4], 0
    %s11 = scalar_lea.sflag [#allocation4], 1
    %12 = vsyncpa %s11, 0
    %13 = vsyncpa [#allocation7], 0
    %14 = vsyncpa [#allocation11], 0
    %15 = vsyncpa [#allocation5], 0
    %s16 = scalar_lea.sflag [#allocation5], 1
    %17 = vsyncpa %s16, 0
    loop: start=0, step=1, limit=4
    $region2: #{tpu_custom_call.1} parent=1 // loop_pre_header
      _
    $region3: #{tpu_custom_call.1} parent=1 // loop_header
      %s19 = sphi 0, %s23
      %p20 = scmp.ge.s32.totalorder %s19, 4
      %s26 = sphi 0, %s38
      %s27 = sphi 0, %s34
      %s28 = sphi 0, %s26
      %s29 = sphi 0, %s27
      %s30 = sphi 0, %s28
      %s31 = sphi 0, %s29
      %s43 = sphi 0, %s45
      %s46 = sphi 0, %s43
      %s47 = sphi 0, %s46
      %s63 = sphi 0, %s47
      %s67 = sphi 0, %s67
      %s69 = sphi 0, %s67
      %s70 = sphi 0, %s69
      %s84 = sphi 0, %s70
      %s90 = sphi 0, %s92
      %s93 = sphi 0, %s90
      %s94 = sphi 0, %s93
      %s110 = sphi 0, %s94
      %s114 = sphi 0, %s114
      %s116 = sphi 0, %s114
      %s117 = sphi 0, %s116
      %s131 = sphi 0, %s117
      %s135 = sphi 0, %s135
      %s137 = sphi 0, %s135
      %s138 = sphi 0, %s137
      %s152 = sphi 0, %s138
      %s158 = sphi 0, %s160
      %s161 = sphi 0, %s158
      %s162 = sphi 0, %s161
      %s178 = sphi 0, %s162
    $region4: #{tpu_custom_call.1} parent=1 // loop_header_branch
      %22 = sbr.rel (%p20) target = $region8
    $region5: #{tpu_custom_call.1} parent=1 // loop_body
      %s24 = ssub.s32 %s19, 1
      %s25 = ssub.s32 %s19, 2
      %s32 = sadd.s32 1, %s27
      %p33 = scmp.ge.s32.totalorder %s32, 1
      %s34 = scalar_select %p33, 0, %s32
      %s35 = sadd.s32 1, %s26
      %s36 = scalar_select %p33, %s35, %s26
      %p37 = scmp.ge.s32.totalorder %s36, 2
      %s38 = scalar_select %p37, 0, %s36
      %s39 = ssub.s32 %s26, %s38
      %s40 = ssub.s32 %s27, %s34
      %s41 = sor.u32 %s39, %s40
      %p42 = scmp.eq.s32.totalorder %s41, 0
      %s44 = sadd.s32 %s43, 1
      %s45 = scalar_select %p42, %s43, %s44
      %p48 = pneg %p42
      %p49 = scmp.eq.s32.totalorder %s19, 1
      %p50 = por %p48, %p49
      %p51 = scmp.ne.s32.totalorder %s43, %s46
      %p52 = scmp.eq.s32.totalorder %s19, 0
      %p53 = por %p51, %p52
      %p54 = scmp.ne.s32.totalorder %s43, %s46
      %p55 = scmp.eq.s32.totalorder %s24, 1
      %p56 = por %p54, %p55
      %p57 = scmp.ne.s32.totalorder %s46, %s47
      %p58 = scmp.eq.s32.totalorder %s24, 0
      %p59 = por %p57, %p58
      %p60 = scmp.ne.s32.totalorder %s46, %s47
      %p61 = scmp.eq.s32.totalorder %s25, 1
      %p62 = por %p60, %p61
      %p64 = scmp.ne.s32.totalorder %s47, %s63
      %p65 = scmp.eq.s32.totalorder %s25, 0
      %p66 = por %p64, %p65
      %s68 = sadd.s32 %s67, 1
      %p71 = scmp.eq.s32.totalorder %s19, 1
      %p72 = scmp.ne.s32.totalorder %s67, %s69
      %p73 = scmp.eq.s32.totalorder %s19, 0
      %p74 = por %p72, %p73
      %p75 = scmp.ne.s32.totalorder %s67, %s69
      %p76 = scmp.eq.s32.totalorder %s24, 1
      %p77 = por %p75, %p76
      %p78 = scmp.ne.s32.totalorder %s69, %s70
      %p79 = scmp.eq.s32.totalorder %s24, 0
      %p80 = por %p78, %p79
      %p81 = scmp.ne.s32.totalorder %s69, %s70
      %p82 = scmp.eq.s32.totalorder %s25, 1
      %p83 = por %p81, %p82
      %p85 = scmp.ne.s32.totalorder %s70, %s84
      %p86 = scmp.eq.s32.totalorder %s25, 0
      %p87 = por %p85, %p86
      %s88 = ssub.s32 %s26, %s38
      %p89 = scmp.eq.s32.totalorder %s88, 0
      %s91 = sadd.s32 %s90, 1
      %s92 = scalar_select %p89, %s90, %s91
      %p95 = pneg %p89
      %p96 = scmp.eq.s32.totalorder %s19, 1
      %p97 = por %p95, %p96
      %p98 = scmp.ne.s32.totalorder %s90, %s93
      %p99 = scmp.eq.s32.totalorder %s19, 0
      %p100 = por %p98, %p99
      %p101 = scmp.ne.s32.totalorder %s90, %s93
      %p102 = scmp.eq.s32.totalorder %s24, 1
      %p103 = por %p101, %p102
      %p104 = scmp.ne.s32.totalorder %s93, %s94
      %p105 = scmp.eq.s32.totalorder %s24, 0
      %p106 = por %p104, %p105
      %p107 = scmp.ne.s32.totalorder %s93, %s94
      %p108 = scmp.eq.s32.totalorder %s25, 1
      %p109 = por %p107, %p108
      %p111 = scmp.ne.s32.totalorder %s94, %s110
      %p112 = scmp.eq.s32.totalorder %s25, 0
      %p113 = por %p111, %p112
      %s115 = sadd.s32 %s114, 1
      %p118 = scmp.eq.s32.totalorder %s19, 1
      %p119 = scmp.ne.s32.totalorder %s114, %s116
      %p120 = scmp.eq.s32.totalorder %s19, 0
      %p121 = por %p119, %p120
      %p122 = scmp.ne.s32.totalorder %s114, %s116
      %p123 = scmp.eq.s32.totalorder %s24, 1
      %p124 = por %p122, %p123
      %p125 = scmp.ne.s32.totalorder %s116, %s117
      %p126 = scmp.eq.s32.totalorder %s24, 0
      %p127 = por %p125, %p126
      %p128 = scmp.ne.s32.totalorder %s116, %s117
      %p129 = scmp.eq.s32.totalorder %s25, 1
      %p130 = por %p128, %p129
      %p132 = scmp.ne.s32.totalorder %s117, %s131
      %p133 = scmp.eq.s32.totalorder %s25, 0
      %p134 = por %p132, %p133
      %s136 = sadd.s32 %s135, 1
      %p139 = scmp.eq.s32.totalorder %s19, 1
      %p140 = scmp.ne.s32.totalorder %s135, %s137
      %p141 = scmp.eq.s32.totalorder %s19, 0
      %p142 = por %p140, %p141
      %p143 = scmp.ne.s32.totalorder %s135, %s137
      %p144 = scmp.eq.s32.totalorder %s24, 1
      %p145 = por %p143, %p144
      %p146 = scmp.ne.s32.totalorder %s137, %s138
      %p147 = scmp.eq.s32.totalorder %s24, 0
      %p148 = por %p146, %p147
      %p149 = scmp.ne.s32.totalorder %s137, %s138
      %p150 = scmp.eq.s32.totalorder %s25, 1
      %p151 = por %p149, %p150
      %p153 = scmp.ne.s32.totalorder %s138, %s152
      %p154 = scmp.eq.s32.totalorder %s25, 0
      %p155 = por %p153, %p154
      %s156 = ssub.s32 %s26, %s38
      %p157 = scmp.eq.s32.totalorder %s156, 0
      %s159 = sadd.s32 %s158, 1
      %s160 = scalar_select %p157, %s158, %s159
      %p163 = pneg %p157
      %p164 = scmp.eq.s32.totalorder %s19, 1
      %p165 = por %p163, %p164
      %p166 = scmp.ne.s32.totalorder %s158, %s161
      %p167 = scmp.eq.s32.totalorder %s19, 0
      %p168 = por %p166, %p167
      %p169 = scmp.ne.s32.totalorder %s158, %s161
      %p170 = scmp.eq.s32.totalorder %s24, 1
      %p171 = por %p169, %p170
      %p172 = scmp.ne.s32.totalorder %s161, %s162
      %p173 = scmp.eq.s32.totalorder %s24, 0
      %p174 = por %p172, %p173
      %p175 = scmp.ne.s32.totalorder %s161, %s162
      %p176 = scmp.eq.s32.totalorder %s25, 1
      %p177 = por %p175, %p176
      %p179 = scmp.ne.s32.totalorder %s162, %s178
      %p180 = scmp.eq.s32.totalorder %s25, 0
      %p181 = por %p179, %p180
      %p182 = scmp.le.s32.totalorder 1, %s19
      %p183 = scmp.lt.s32.totalorder %s19, 3
      %p184 = pnand %p182, %p183
      %p185 = pneg %p184
      // Predicated region
      $region9: #{tpu_custom_call.1} parent=5 // pred_check
        _
      $region10: #{tpu_custom_call.1} parent=5 // pred_check_branch
        %187 = sbr.rel (%p184) target = $region12
      $region11: #{tpu_custom_call.1} parent=5 // pred_region
        %s188 = ssub.s32 %s19, 1
        // Predicated region
        $region13: #{tpu_custom_call.1} parent=11 // pred_check
          %p189 = pneg %p80
        $region14: #{tpu_custom_call.1} parent=11 // pred_check_branch
          %191 = sbr.rel (%p189) target = $region16
        $region15: #{tpu_custom_call.1} parent=11 // pred_region
          %193 = vsyncadd [#allocation7], 0
          %s194 = sshll.u32 %s1, 4
          %s195 = int_to_ptr.hbm [resolvable:$true] %s194
          %s196 = sshll.u32 [#allocation6], 4
          %s197 = int_to_ptr.vmem [resolvable:$true] %s196
          %202 = dma.hbm_to_vmem [thread:$0]  %s195, 4096, %s197, [#allocation7], 128, 128, 8
        $region16: #{tpu_custom_call.1} parent=11 // pred_fallthru
          _
        // Predicated region
        $region17: #{tpu_custom_call.1} parent=11 // pred_check
          %p203 = pneg %p127
        $region18: #{tpu_custom_call.1} parent=11 // pred_check_branch
          %205 = sbr.rel (%p203) target = $region20
        $region19: #{tpu_custom_call.1} parent=11 // pred_region
          %207 = vsyncadd [#allocation7], 0
          %s208 = sshll.u32 %s3, 4
          %s209 = int_to_ptr.hbm [resolvable:$true] %s208
          %s210 = sshll.u32 [#allocation9], 4
          %s211 = int_to_ptr.vmem [resolvable:$true] %s210
          %216 = dma.hbm_to_vmem [thread:$0]  %s209, 2048, %s211, [#allocation7], 128, 128, 8
        $region20: #{tpu_custom_call.1} parent=11 // pred_fallthru
          _
        // Predicated region
        $region21: #{tpu_custom_call.1} parent=11 // pred_check
          %p217 = pneg %p148
        $region22: #{tpu_custom_call.1} parent=11 // pred_check_branch
          %219 = sbr.rel (%p217) target = $region24
        $region23: #{tpu_custom_call.1} parent=11 // pred_region
          %221 = vsyncadd [#allocation11], 0
          %s222 = sshll.u32 %s4, 4
          %s223 = int_to_ptr.hbm [resolvable:$true] %s222
          %s224 = sshll.u32 [#allocation10], 4
          %s225 = int_to_ptr.vmem [resolvable:$true] %s224
          %230 = dma.hbm_to_vmem [thread:$0]  %s223, 2048, %s225, [#allocation11], 128, 128, 8
        $region24: #{tpu_custom_call.1} parent=11 // pred_fallthru
          _
      $region12: #{tpu_custom_call.1} parent=5 // pred_fallthru
        _
      %p231 = scmp.lt.s32.totalorder %s19, 2
      // Predicated region
      $region25: #{tpu_custom_call.1} parent=5 // pred_check
        %p232 = pneg %p231
      $region26: #{tpu_custom_call.1} parent=5 // pred_check_branch
        %234 = sbr.rel (%p232) target = $region28
      $region27: #{tpu_custom_call.1} parent=5 // pred_region
        // Predicated region
        $region29: #{tpu_custom_call.1} parent=27 // pred_check
          %p235 = pneg %p53
        $region30: #{tpu_custom_call.1} parent=27 // pred_check_branch
          %237 = sbr.rel (%p235) target = $region32
        $region31: #{tpu_custom_call.1} parent=27 // pred_region
          %s238 = sand.u32 %s19, 1
          %s239 = scalar_lea.sflag [#allocation4], %s238
          %s240 = sand.u32 %s43, 1
          %s241 = smul.addr %s240, 128
          %s242 = scalar_lea.vmem [#allocation3], %s241
          %s243 = smul.u32 16, %s26
          %s244 = smul.u32 2, %s27
          %246 = vsyncadd %s239, 0
          %s247 = smul.addr %s243, 2
          %s248 = sadd.s32 %s244, %s247
          %s249 = smul.addr %s248, 4
          %s250 = scalar_lea.hbm %s0, %s249
          %s251 = sshll.u32 %s250, 4
          %s252 = int_to_ptr.hbm [resolvable:$true] %s251
          %s253 = sshll.u32 %s242, 4
          %s254 = int_to_ptr.vmem [resolvable:$true] %s253
          %259 = dma.hbm_to_vmem [thread:$0]  %s252, 2048, %s254, %s239, 128, 128, 8
        $region32: #{tpu_custom_call.1} parent=27 // pred_fallthru
          _
        // Predicated region
        $region33: #{tpu_custom_call.1} parent=27 // pred_check
          %p260 = pneg %p100
        $region34: #{tpu_custom_call.1} parent=27 // pred_check_branch
          %262 = sbr.rel (%p260) target = $region36
        $region35: #{tpu_custom_call.1} parent=27 // pred_region
          %s263 = sand.u32 %s19, 1
          %s264 = scalar_lea.sflag [#allocation4], %s263
          %s265 = sand.u32 %s90, 1
          %s266 = smul.addr %s265, 128
          %s267 = scalar_lea.vmem [#allocation8], %s266
          %s268 = smul.u32 16, %s26
          %270 = vsyncadd %s264, 0
          %s271 = smul.addr %s268, 8
          %s272 = scalar_lea.hbm %s2, %s271
          %s273 = sshll.u32 %s272, 4
          %s274 = int_to_ptr.hbm [resolvable:$true] %s273
          %s275 = sshll.u32 %s267, 4
          %s276 = int_to_ptr.vmem [resolvable:$true] %s275
          %281 = dma.hbm_to_vmem [thread:$0]  %s274, 2048, %s276, %s264, 128, 128, 8
        $region36: #{tpu_custom_call.1} parent=27 // pred_fallthru
          _
      $region28: #{tpu_custom_call.1} parent=5 // pred_fallthru
        _
      %p282 = scmp.le.s32.totalorder 1, %s19
      %p283 = scmp.lt.s32.totalorder %s19, 3
      %p284 = pnand %p282, %p283
      %p285 = pneg %p284
      // Predicated region
      $region37: #{tpu_custom_call.1} parent=5 // pred_check
        _
      $region38: #{tpu_custom_call.1} parent=5 // pred_check_branch
        %287 = sbr.rel (%p284) target = $region40
      $region39: #{tpu_custom_call.1} parent=5 // pred_region
        %s288 = ssub.s32 %s19, 1
        %s289 = sand.u32 %s24, 1
        %s290 = scalar_lea.sflag [#allocation4], %s289
        %s291 = sand.u32 %s46, 1
        %s292 = smul.addr %s291, 128
        %s293 = scalar_lea.vmem [#allocation3], %s292
        // Predicated region
        $region41: #{tpu_custom_call.1} parent=39 // pred_check
          %p294 = pneg %p59
        $region42: #{tpu_custom_call.1} parent=39 // pred_check_branch
          %296 = sbr.rel (%p294) target = $region44
        $region43: #{tpu_custom_call.1} parent=39 // pred_region
          %298 = dma.done %s290, 2048
        $region44: #{tpu_custom_call.1} parent=39 // pred_fallthru
          _
        // Predicated region
        $region45: #{tpu_custom_call.1} parent=39 // pred_check
          %p299 = pneg %p80
        $region46: #{tpu_custom_call.1} parent=39 // pred_check_branch
          %301 = sbr.rel (%p299) target = $region48
        $region47: #{tpu_custom_call.1} parent=39 // pred_region
          %303 = dma.done [#allocation7], 4096
        $region48: #{tpu_custom_call.1} parent=39 // pred_fallthru
          _
        %s304 = sand.u32 %s24, 1
        %s305 = scalar_lea.sflag [#allocation4], %s304
        %s306 = sand.u32 %s93, 1
        %s307 = smul.addr %s306, 128
        %s308 = scalar_lea.vmem [#allocation8], %s307
        // Predicated region
        $region49: #{tpu_custom_call.1} parent=39 // pred_check
          %p309 = pneg %p106
        $region50: #{tpu_custom_call.1} parent=39 // pred_check_branch
          %311 = sbr.rel (%p309) target = $region52
        $region51: #{tpu_custom_call.1} parent=39 // pred_region
          %313 = dma.done %s305, 2048
        $region52: #{tpu_custom_call.1} parent=39 // pred_fallthru
          _
        // Predicated region
        $region53: #{tpu_custom_call.1} parent=39 // pred_check
          %p314 = pneg %p127
        $region54: #{tpu_custom_call.1} parent=39 // pred_check_branch
          %316 = sbr.rel (%p314) target = $region56
        $region55: #{tpu_custom_call.1} parent=39 // pred_region
          %318 = dma.done [#allocation7], 2048
        $region56: #{tpu_custom_call.1} parent=39 // pred_fallthru
          _
        // Predicated region
        $region57: #{tpu_custom_call.1} parent=39 // pred_check
          %p319 = pneg %p148
        $region58: #{tpu_custom_call.1} parent=39 // pred_check_branch
          %321 = sbr.rel (%p319) target = $region60
        $region59: #{tpu_custom_call.1} parent=39 // pred_region
          %323 = dma.done [#allocation11], 2048
        $region60: #{tpu_custom_call.1} parent=39 // pred_fallthru
          _
        %s324 = sand.u32 %s24, 1
        %s325 = scalar_lea.sflag [#allocation4], %s324
        %s326 = sand.u32 %s46, 1
        %s327 = smul.addr %s326, 128
        %s328 = scalar_lea.vmem [#allocation3], %s327
        %p329 = pneg %p59
        %p330 = pneg %p56
        %p331 = pneg %p80
        %p332 = pneg %p77
        %s333 = sand.u32 %s24, 1
        %s334 = scalar_lea.sflag [#allocation4], %s333
        %s335 = sand.u32 %s93, 1
        %s336 = smul.addr %s335, 128
        %s337 = scalar_lea.vmem [#allocation8], %s336
        %p338 = pneg %p106
        %p339 = pneg %p103
        %p340 = pneg %p127
        %p341 = pneg %p124
        %p342 = pneg %p148
        %p343 = pneg %p145
        %p344 = pneg %p174
        %p345 = pneg %p171
        %s346 = sand.u32 %s161, 1
        %s347 = scalar_lea.sflag [#allocation5], %s346
        %s348 = sand.u32 %s161, 1
        %s349 = smul.addr %s348, 128
        %s350 = scalar_lea.vmem [#allocation12], %s349
        %s351 = smul.u32 16, %s28
        %s352 = smul.u32 2, %s29
        %s353 = smul.u32 16, %s28
        %s354 = smul.u32 16, %s28
        %p355 = scmp.eq.s32.totalorder %s29, 0
        // Predicated region
        $region61: #{tpu_custom_call.1} parent=39 // pred_check
          %p356 = pneg %p355
        $region62: #{tpu_custom_call.1} parent=39 // pred_check_branch
          %358 = sbr.rel (%p356) target = $region64
        $region63: #{tpu_custom_call.1} parent=39 // pred_region
          %359 = vst [vmem:[#allocation2] sm:$0xff] 0.0
          %360 = vst [vmem:[#allocation2 + $0x8] sm:$0xff] 0.0
          %361 = vst [vmem:[#allocation2 + $0x10] sm:$0xff] 0.0
          %362 = vst [vmem:[#allocation2 + $0x18] sm:$0xff] 0.0
          %363 = vst [vmem:[#allocation2 + $0x20] sm:$0xff] 0.0
          %364 = vst [vmem:[#allocation2 + $0x28] sm:$0xff] 0.0
          %365 = vst [vmem:[#allocation2 + $0x30] sm:$0xff] 0.0
          %366 = vst [vmem:[#allocation2 + $0x38] sm:$0xff] 0.0
          %367 = vst [vmem:[#allocation2 + $0x40] sm:$0xff] 0.0
          %368 = vst [vmem:[#allocation2 + $0x48] sm:$0xff] 0.0
          %369 = vst [vmem:[#allocation2 + $0x50] sm:$0xff] 0.0
          %370 = vst [vmem:[#allocation2 + $0x58] sm:$0xff] 0.0
          %371 = vst [vmem:[#allocation2 + $0x60] sm:$0xff] 0.0
          %372 = vst [vmem:[#allocation2 + $0x68] sm:$0xff] 0.0
          %373 = vst [vmem:[#allocation2 + $0x70] sm:$0xff] 0.0
          %374 = vst [vmem:[#allocation2 + $0x78] sm:$0xff] 0.0
        $region64: #{tpu_custom_call.1} parent=39 // pred_fallthru
          _
        %v375 = vld [vmem:[%s293] sm:$0xff]
        %v376 = vld [vmem:[%s293 + $0x8] sm:$0xff]
        %v377 = vld [vmem:[%s293 + $0x10] sm:$0xff]
        %v378 = vld [vmem:[%s293 + $0x18] sm:$0xff]
        %v379 = vld [vmem:[%s293 + $0x20] sm:$0xff]
        %v380 = vld [vmem:[%s293 + $0x28] sm:$0xff]
        %v381 = vld [vmem:[%s293 + $0x30] sm:$0xff]
        %v382 = vld [vmem:[%s293 + $0x38] sm:$0xff]
        %v383 = vld [vmem:[%s293 + $0x40] sm:$0xff]
        %v384 = vld [vmem:[%s293 + $0x48] sm:$0xff]
        %v385 = vld [vmem:[%s293 + $0x50] sm:$0xff]
        %v386 = vld [vmem:[%s293 + $0x58] sm:$0xff]
        %v387 = vld [vmem:[%s293 + $0x60] sm:$0xff]
        %v388 = vld [vmem:[%s293 + $0x68] sm:$0xff]
        %v389 = vld [vmem:[%s293 + $0x70] sm:$0xff]
        %v390 = vld [vmem:[%s293 + $0x78] sm:$0xff]
        %v391 = vunpack.c.l.bf16 %v375
        %v392 = vunpack.c.h.bf16 %v375
        %v393 = vunpack.c.l.bf16 %v376
        %v394 = vunpack.c.h.bf16 %v376
        %v395 = vunpack.c.l.bf16 %v377
        %v396 = vunpack.c.h.bf16 %v377
        %v397 = vunpack.c.l.bf16 %v378
        %v398 = vunpack.c.h.bf16 %v378
        %v399 = vunpack.c.l.bf16 %v379
        %v400 = vunpack.c.h.bf16 %v379
        %v401 = vunpack.c.l.bf16 %v380
        %v402 = vunpack.c.h.bf16 %v380
        %v403 = vunpack.c.l.bf16 %v381
        %v404 = vunpack.c.h.bf16 %v381
        %v405 = vunpack.c.l.bf16 %v382
        %v406 = vunpack.c.h.bf16 %v382
        %v407 = vunpack.c.l.bf16 %v383
        %v408 = vunpack.c.h.bf16 %v383
        %v409 = vunpack.c.l.bf16 %v384
        %v410 = vunpack.c.h.bf16 %v384
        %v411 = vunpack.c.l.bf16 %v385
        %v412 = vunpack.c.h.bf16 %v385
        %v413 = vunpack.c.l.bf16 %v386
        %v414 = vunpack.c.h.bf16 %v386
        %v415 = vunpack.c.l.bf16 %v387
        %v416 = vunpack.c.h.bf16 %v387
        %v417 = vunpack.c.l.bf16 %v388
        %v418 = vunpack.c.h.bf16 %v388
        %v419 = vunpack.c.l.bf16 %v389
        %v420 = vunpack.c.h.bf16 %v389
        %v421 = vunpack.c.l.bf16 %v390
        %v422 = vunpack.c.h.bf16 %v390
        %s423 = smul.u32 %s29, 256
        %s424 = scalar_lea.vmem [#allocation6], %s423
        %v425 = vld [vmem:[%s424] sm:$0xff]
        %v426 = vld [vmem:[%s424 + $0x8] sm:$0xff]
        %v427 = vld [vmem:[%s424 + $0x10] sm:$0xff]
        %v428 = vld [vmem:[%s424 + $0x18] sm:$0xff]
        %v429 = vld [vmem:[%s424 + $0x20] sm:$0xff]
        %v430 = vld [vmem:[%s424 + $0x28] sm:$0xff]
        %v431 = vld [vmem:[%s424 + $0x30] sm:$0xff]
        %v432 = vld [vmem:[%s424 + $0x38] sm:$0xff]
        %v433 = vld [vmem:[%s424 + $0x40] sm:$0xff]
        %v434 = vld [vmem:[%s424 + $0x48] sm:$0xff]
        %v435 = vld [vmem:[%s424 + $0x50] sm:$0xff]
        %v436 = vld [vmem:[%s424 + $0x58] sm:$0xff]
        %v437 = vld [vmem:[%s424 + $0x60] sm:$0xff]
        %v438 = vld [vmem:[%s424 + $0x68] sm:$0xff]
        %v439 = vld [vmem:[%s424 + $0x70] sm:$0xff]
        %v440 = vld [vmem:[%s424 + $0x78] sm:$0xff]
        %v441 = vld [vmem:[%s424 + $0x80] sm:$0xff]
        %v442 = vld [vmem:[%s424 + $0x88] sm:$0xff]
        %v443 = vld [vmem:[%s424 + $0x90] sm:$0xff]
        %v444 = vld [vmem:[%s424 + $0x98] sm:$0xff]
        %v445 = vld [vmem:[%s424 + $0xa0] sm:$0xff]
        %v446 = vld [vmem:[%s424 + $0xa8] sm:$0xff]
        %v447 = vld [vmem:[%s424 + $0xb0] sm:$0xff]
        %v448 = vld [vmem:[%s424 + $0xb8] sm:$0xff]
        %v449 = vld [vmem:[%s424 + $0xc0] sm:$0xff]
        %v450 = vld [vmem:[%s424 + $0xc8] sm:$0xff]
        %v451 = vld [vmem:[%s424 + $0xd0] sm:$0xff]
        %v452 = vld [vmem:[%s424 + $0xd8] sm:$0xff]
        %v453 = vld [vmem:[%s424 + $0xe0] sm:$0xff]
        %v454 = vld [vmem:[%s424 + $0xe8] sm:$0xff]
        %v455 = vld [vmem:[%s424 + $0xf0] sm:$0xff]
        %v456 = vld [vmem:[%s424 + $0xf8] sm:$0xff]
        %v457 = vld [vmem:[#allocation2] sm:$0xff]
        %v458 = vld [vmem:[#allocation2 + $0x8] sm:$0xff]
        %v459 = vld [vmem:[#allocation2 + $0x10] sm:$0xff]
        %v460 = vld [vmem:[#allocation2 + $0x18] sm:$0xff]
        %v461 = vld [vmem:[#allocation2 + $0x20] sm:$0xff]
        %v462 = vld [vmem:[#allocation2 + $0x28] sm:$0xff]
        %v463 = vld [vmem:[#allocation2 + $0x30] sm:$0xff]
        %v464 = vld [vmem:[#allocation2 + $0x38] sm:$0xff]
        %v465 = vld [vmem:[#allocation2 + $0x40] sm:$0xff]
        %v466 = vld [vmem:[#allocation2 + $0x48] sm:$0xff]
        %v467 = vld [vmem:[#allocation2 + $0x50] sm:$0xff]
        %v468 = vld [vmem:[#allocation2 + $0x58] sm:$0xff]
        %v469 = vld [vmem:[#allocation2 + $0x60] sm:$0xff]
        %v470 = vld [vmem:[#allocation2 + $0x68] sm:$0xff]
        %v471 = vld [vmem:[#allocation2 + $0x70] sm:$0xff]
        %v472 = vld [vmem:[#allocation2 + $0x78] sm:$0xff]
        %473 = vmatpush.msra.mxu0 %v440
        %474 = vmatpush.msra.mxu0 %v439
        %475 = vmatpush.msra.mxu0 %v438
        %476 = vmatpush.msra.mxu0 %v437
        %477 = vmatpush.msra.mxu0 %v436
        %478 = vmatpush.msra.mxu0 %v435
        %479 = vmatpush.msra.mxu0 %v434
        %480 = vmatpush.msra.mxu0 %v433
        %481 = vmatpush.msra.mxu0 %v432
        %482 = vmatpush.msra.mxu0 %v431
        %483 = vmatpush.msra.mxu0 %v430
        %484 = vmatpush.msra.mxu0 %v429
        %485 = vmatpush.msra.mxu0 %v428
        %486 = vmatpush.msra.mxu0 %v427
        %487 = vmatpush.msra.mxu0 %v426
        %488 = vmatpush.msra.mxu0 %v425
        %489 = vmatmul.f32.gmra.mxu0 %v391
        %v490 = vpop.f32.mrf.mxu0
        %v491 = vadd.f32 0.0, %v490
        %492 = vmatmul.f32.gmra.mxu0 %v393
        %v493 = vpop.f32.mrf.mxu0
        %v494 = vadd.f32 0.0, %v493
        %495 = vmatmul.f32.gmra.mxu0 %v395
        %v496 = vpop.f32.mrf.mxu0
        %v497 = vadd.f32 0.0, %v496
        %498 = vmatmul.f32.gmra.mxu0 %v397
        %v499 = vpop.f32.mrf.mxu0
        %v500 = vadd.f32 0.0, %v499
        %501 = vmatmul.f32.gmra.mxu0 %v399
        %v502 = vpop.f32.mrf.mxu0
        %v503 = vadd.f32 0.0, %v502
        %504 = vmatmul.f32.gmra.mxu0 %v401
        %v505 = vpop.f32.mrf.mxu0
        %v506 = vadd.f32 0.0, %v505
        %507 = vmatmul.f32.gmra.mxu0 %v403
        %v508 = vpop.f32.mrf.mxu0
        %v509 = vadd.f32 0.0, %v508
        %510 = vmatmul.f32.gmra.mxu0 %v405
        %v511 = vpop.f32.mrf.mxu0
        %v512 = vadd.f32 0.0, %v511
        %513 = vmatmul.f32.gmra.mxu0 %v407
        %v514 = vpop.f32.mrf.mxu0
        %v515 = vadd.f32 0.0, %v514
        %516 = vmatmul.f32.gmra.mxu0 %v409
        %v517 = vpop.f32.mrf.mxu0
        %v518 = vadd.f32 0.0, %v517
        %519 = vmatmul.f32.gmra.mxu0 %v411
        %v520 = vpop.f32.mrf.mxu0
        %v521 = vadd.f32 0.0, %v520
        %522 = vmatmul.f32.gmra.mxu0 %v413
        %v523 = vpop.f32.mrf.mxu0
        %v524 = vadd.f32 0.0, %v523
        %525 = vmatmul.f32.gmra.mxu0 %v415
        %v526 = vpop.f32.mrf.mxu0
        %v527 = vadd.f32 0.0, %v526
        %528 = vmatmul.f32.gmra.mxu0 %v417
        %v529 = vpop.f32.mrf.mxu0
        %v530 = vadd.f32 0.0, %v529
        %531 = vmatmul.f32.gmra.mxu0 %v419
        %v532 = vpop.f32.mrf.mxu0
        %v533 = vadd.f32 0.0, %v532
        %534 = vmatmul.f32.gmra.mxu0 %v421
        %v535 = vpop.f32.mrf.mxu0
        %v536 = vadd.f32 0.0, %v535
        %537 = vdwg.mxu0
        %538 = vmatpush.msra.mxu0 %v456
        %539 = vmatpush.msra.mxu0 %v455
        %540 = vmatpush.msra.mxu0 %v454
        %541 = vmatpush.msra.mxu0 %v453
        %542 = vmatpush.msra.mxu0 %v452
        %543 = vmatpush.msra.mxu0 %v451
        %544 = vmatpush.msra.mxu0 %v450
        %545 = vmatpush.msra.mxu0 %v449
        %546 = vmatpush.msra.mxu0 %v448
        %547 = vmatpush.msra.mxu0 %v447
        %548 = vmatpush.msra.mxu0 %v446
        %549 = vmatpush.msra.mxu0 %v445
        %550 = vmatpush.msra.mxu0 %v444
        %551 = vmatpush.msra.mxu0 %v443
        %552 = vmatpush.msra.mxu0 %v442
        %553 = vmatpush.msra.mxu0 %v441
        %554 = vmatmul.f32.gmra.mxu0 %v392
        %v555 = vpop.f32.mrf.mxu0
        %v556 = vadd.f32 %v491, %v555
        %557 = vmatmul.f32.gmra.mxu0 %v394
        %v558 = vpop.f32.mrf.mxu0
        %v559 = vadd.f32 %v494, %v558
        %560 = vmatmul.f32.gmra.mxu0 %v396
        %v561 = vpop.f32.mrf.mxu0
        %v562 = vadd.f32 %v497, %v561
        %563 = vmatmul.f32.gmra.mxu0 %v398
        %v564 = vpop.f32.mrf.mxu0
        %v565 = vadd.f32 %v500, %v564
        %566 = vmatmul.f32.gmra.mxu0 %v400
        %v567 = vpop.f32.mrf.mxu0
        %v568 = vadd.f32 %v503, %v567
        %569 = vmatmul.f32.gmra.mxu0 %v402
        %v570 = vpop.f32.mrf.mxu0
        %v571 = vadd.f32 %v506, %v570
        %572 = vmatmul.f32.gmra.mxu0 %v404
        %v573 = vpop.f32.mrf.mxu0
        %v574 = vadd.f32 %v509, %v573
        %575 = vmatmul.f32.gmra.mxu0 %v406
        %v576 = vpop.f32.mrf.mxu0
        %v577 = vadd.f32 %v512, %v576
        %578 = vmatmul.f32.gmra.mxu0 %v408
        %v579 = vpop.f32.mrf.mxu0
        %v580 = vadd.f32 %v515, %v579
        %581 = vmatmul.f32.gmra.mxu0 %v410
        %v582 = vpop.f32.mrf.mxu0
        %v583 = vadd.f32 %v518, %v582
        %584 = vmatmul.f32.gmra.mxu0 %v412
        %v585 = vpop.f32.mrf.mxu0
        %v586 = vadd.f32 %v521, %v585
        %587 = vmatmul.f32.gmra.mxu0 %v414
        %v588 = vpop.f32.mrf.mxu0
        %v589 = vadd.f32 %v524, %v588
        %590 = vmatmul.f32.gmra.mxu0 %v416
        %v591 = vpop.f32.mrf.mxu0
        %v592 = vadd.f32 %v527, %v591
        %593 = vmatmul.f32.gmra.mxu0 %v418
        %v594 = vpop.f32.mrf.mxu0
        %v595 = vadd.f32 %v530, %v594
        %596 = vmatmul.f32.gmra.mxu0 %v420
        %v597 = vpop.f32.mrf.mxu0
        %v598 = vadd.f32 %v533, %v597
        %599 = vmatmul.f32.gmra.mxu0 %v422
        %v600 = vpop.f32.mrf.mxu0
        %v601 = vadd.f32 %v536, %v600
        %602 = vdwg.mxu0
        %v603 = vadd.f32 %v457, %v556
        %v604 = vadd.f32 %v458, %v559
        %v605 = vadd.f32 %v459, %v562
        %v606 = vadd.f32 %v460, %v565
        %v607 = vadd.f32 %v461, %v568
        %v608 = vadd.f32 %v462, %v571
        %v609 = vadd.f32 %v463, %v574
        %v610 = vadd.f32 %v464, %v577
        %v611 = vadd.f32 %v465, %v580
        %v612 = vadd.f32 %v466, %v583
        %v613 = vadd.f32 %v467, %v586
        %v614 = vadd.f32 %v468, %v589
        %v615 = vadd.f32 %v469, %v592
        %v616 = vadd.f32 %v470, %v595
        %v617 = vadd.f32 %v471, %v598
        %v618 = vadd.f32 %v472, %v601
        %619 = vst [vmem:[#allocation2] sm:$0xff] %v603
        %620 = vst [vmem:[#allocation2 + $0x8] sm:$0xff] %v604
        %621 = vst [vmem:[#allocation2 + $0x10] sm:$0xff] %v605
        %622 = vst [vmem:[#allocation2 + $0x18] sm:$0xff] %v606
        %623 = vst [vmem:[#allocation2 + $0x20] sm:$0xff] %v607
        %624 = vst [vmem:[#allocation2 + $0x28] sm:$0xff] %v608
        %625 = vst [vmem:[#allocation2 + $0x30] sm:$0xff] %v609
        %626 = vst [vmem:[#allocation2 + $0x38] sm:$0xff] %v610
        %627 = vst [vmem:[#allocation2 + $0x40] sm:$0xff] %v611
        %628 = vst [vmem:[#allocation2 + $0x48] sm:$0xff] %v612
        %629 = vst [vmem:[#allocation2 + $0x50] sm:$0xff] %v613
        %630 = vst [vmem:[#allocation2 + $0x58] sm:$0xff] %v614
        %631 = vst [vmem:[#allocation2 + $0x60] sm:$0xff] %v615
        %632 = vst [vmem:[#allocation2 + $0x68] sm:$0xff] %v616
        %633 = vst [vmem:[#allocation2 + $0x70] sm:$0xff] %v617
        %634 = vst [vmem:[#allocation2 + $0x78] sm:$0xff] %v618
        // Predicated region
        $region65: #{tpu_custom_call.1} parent=39 // pred_check
          %p635 = pneg %p355
        $region66: #{tpu_custom_call.1} parent=39 // pred_check_branch
          %637 = sbr.rel (%p635) target = $region68
        $region67: #{tpu_custom_call.1} parent=39 // pred_region
          %v638 = vld [vmem:[#allocation2] sm:$0xff]
          %v639 = vld [vmem:[#allocation2 + $0x8] sm:$0xff]
          %v640 = vld [vmem:[#allocation2 + $0x10] sm:$0xff]
          %v641 = vld [vmem:[#allocation2 + $0x18] sm:$0xff]
          %v642 = vld [vmem:[#allocation2 + $0x20] sm:$0xff]
          %v643 = vld [vmem:[#allocation2 + $0x28] sm:$0xff]
          %v644 = vld [vmem:[#allocation2 + $0x30] sm:$0xff]
          %v645 = vld [vmem:[#allocation2 + $0x38] sm:$0xff]
          %v646 = vld [vmem:[#allocation2 + $0x40] sm:$0xff]
          %v647 = vld [vmem:[#allocation2 + $0x48] sm:$0xff]
          %v648 = vld [vmem:[#allocation2 + $0x50] sm:$0xff]
          %v649 = vld [vmem:[#allocation2 + $0x58] sm:$0xff]
          %v650 = vld [vmem:[#allocation2 + $0x60] sm:$0xff]
          %v651 = vld [vmem:[#allocation2 + $0x68] sm:$0xff]
          %v652 = vld [vmem:[#allocation2 + $0x70] sm:$0xff]
          %v653 = vld [vmem:[#allocation2 + $0x78] sm:$0xff]
          %v654 = vadd.f32 %v638, 1.0
          %v655 = vadd.f32 %v639, 1.0
          %v656 = vadd.f32 %v640, 1.0
          %v657 = vadd.f32 %v641, 1.0
          %v658 = vadd.f32 %v642, 1.0
          %v659 = vadd.f32 %v643, 1.0
          %v660 = vadd.f32 %v644, 1.0
          %v661 = vadd.f32 %v645, 1.0
          %v662 = vadd.f32 %v646, 1.0
          %v663 = vadd.f32 %v647, 1.0
          %v664 = vadd.f32 %v648, 1.0
          %v665 = vadd.f32 %v649, 1.0
          %v666 = vadd.f32 %v650, 1.0
          %v667 = vadd.f32 %v651, 1.0
          %v668 = vadd.f32 %v652, 1.0
          %v669 = vadd.f32 %v653, 1.0
          %v670 = vrcp.pop %v654
          %v671 = vrcp.pop %v655
          %v672 = vrcp.pop %v656
          %v673 = vrcp.pop %v657
          %v674 = vrcp.pop %v658
          %v675 = vrcp.pop %v659
          %v676 = vrcp.pop %v660
          %v677 = vrcp.pop %v661
          %v678 = vrcp.pop %v662
          %v679 = vrcp.pop %v663
          %v680 = vrcp.pop %v664
          %v681 = vrcp.pop %v665
          %v682 = vrcp.pop %v666
          %v683 = vrcp.pop %v667
          %v684 = vrcp.pop %v668
          %v685 = vrcp.pop %v669
          %687 = vset.pattern.permute.xlu0 64
          %688 = vperm.xlu0 %687, %v670
          %v689 = vpop.permute.xlu0 %688
          %692 = vset.pattern.permute.xlu0 64
          %693 = vperm.xlu0 %692, %v671
          %v694 = vpop.permute.xlu0 %693
          %697 = vset.pattern.permute.xlu0 64
          %698 = vperm.xlu0 %697, %v672
          %v699 = vpop.permute.xlu0 %698
          %702 = vset.pattern.permute.xlu0 64
          %703 = vperm.xlu0 %702, %v673
          %v704 = vpop.permute.xlu0 %703
          %707 = vset.pattern.permute.xlu0 64
          %708 = vperm.xlu0 %707, %v674
          %v709 = vpop.permute.xlu0 %708
          %712 = vset.pattern.permute.xlu0 64
          %713 = vperm.xlu0 %712, %v675
          %v714 = vpop.permute.xlu0 %713
          %717 = vset.pattern.permute.xlu0 64
          %718 = vperm.xlu0 %717, %v676
          %v719 = vpop.permute.xlu0 %718
          %722 = vset.pattern.permute.xlu0 64
          %723 = vperm.xlu0 %722, %v677
          %v724 = vpop.permute.xlu0 %723
          %727 = vset.pattern.permute.xlu0 64
          %728 = vperm.xlu0 %727, %v678
          %v729 = vpop.permute.xlu0 %728
          %732 = vset.pattern.permute.xlu0 64
          %733 = vperm.xlu0 %732, %v679
          %v734 = vpop.permute.xlu0 %733
          %737 = vset.pattern.permute.xlu0 64
          %738 = vperm.xlu0 %737, %v680
          %v739 = vpop.permute.xlu0 %738
          %742 = vset.pattern.permute.xlu0 64
          %743 = vperm.xlu0 %742, %v681
          %v744 = vpop.permute.xlu0 %743
          %747 = vset.pattern.permute.xlu0 64
          %748 = vperm.xlu0 %747, %v682
          %v749 = vpop.permute.xlu0 %748
          %752 = vset.pattern.permute.xlu0 64
          %753 = vperm.xlu0 %752, %v683
          %v754 = vpop.permute.xlu0 %753
          %757 = vset.pattern.permute.xlu0 64
          %758 = vperm.xlu0 %757, %v684
          %v759 = vpop.permute.xlu0 %758
          %762 = vset.pattern.permute.xlu0 64
          %763 = vperm.xlu0 %762, %v685
          %v764 = vpop.permute.xlu0 %763
          %v766 = vmul.f32 %v638, %v689
          %v767 = vmul.f32 %v639, %v694
          %v768 = vmul.f32 %v640, %v699
          %v769 = vmul.f32 %v641, %v704
          %v770 = vmul.f32 %v642, %v709
          %v771 = vmul.f32 %v643, %v714
          %v772 = vmul.f32 %v644, %v719
          %v773 = vmul.f32 %v645, %v724
          %v774 = vmul.f32 %v646, %v729
          %v775 = vmul.f32 %v647, %v734
          %v776 = vmul.f32 %v648, %v739
          %v777 = vmul.f32 %v649, %v744
          %v778 = vmul.f32 %v650, %v749
          %v779 = vmul.f32 %v651, %v754
          %v780 = vmul.f32 %v652, %v759
          %v781 = vmul.f32 %v653, %v764
          %v782 = vld [vmem:[%s308] sm:$0xff]
          %v783 = vld [vmem:[%s308 + $0x8] sm:$0xff]
          %v784 = vld [vmem:[%s308 + $0x10] sm:$0xff]
          %v785 = vld [vmem:[%s308 + $0x18] sm:$0xff]
          %v786 = vld [vmem:[%s308 + $0x20] sm:$0xff]
          %v787 = vld [vmem:[%s308 + $0x28] sm:$0xff]
          %v788 = vld [vmem:[%s308 + $0x30] sm:$0xff]
          %v789 = vld [vmem:[%s308 + $0x38] sm:$0xff]
          %v790 = vld [vmem:[%s308 + $0x40] sm:$0xff]
          %v791 = vld [vmem:[%s308 + $0x48] sm:$0xff]
          %v792 = vld [vmem:[%s308 + $0x50] sm:$0xff]
          %v793 = vld [vmem:[%s308 + $0x58] sm:$0xff]
          %v794 = vld [vmem:[%s308 + $0x60] sm:$0xff]
          %v795 = vld [vmem:[%s308 + $0x68] sm:$0xff]
          %v796 = vld [vmem:[%s308 + $0x70] sm:$0xff]
          %v797 = vld [vmem:[%s308 + $0x78] sm:$0xff]
          %v798 = vld [vmem:[#allocation9] sm:$0xff]
          %v799 = vld [vmem:[#allocation9 + $0x8] sm:$0xff]
          %v800 = vld [vmem:[#allocation9 + $0x10] sm:$0xff]
          %v801 = vld [vmem:[#allocation9 + $0x18] sm:$0xff]
          %v802 = vld [vmem:[#allocation9 + $0x20] sm:$0xff]
          %v803 = vld [vmem:[#allocation9 + $0x28] sm:$0xff]
          %v804 = vld [vmem:[#allocation9 + $0x30] sm:$0xff]
          %v805 = vld [vmem:[#allocation9 + $0x38] sm:$0xff]
          %v806 = vld [vmem:[#allocation9 + $0x40] sm:$0xff]
          %v807 = vld [vmem:[#allocation9 + $0x48] sm:$0xff]
          %v808 = vld [vmem:[#allocation9 + $0x50] sm:$0xff]
          %v809 = vld [vmem:[#allocation9 + $0x58] sm:$0xff]
          %v810 = vld [vmem:[#allocation9 + $0x60] sm:$0xff]
          %v811 = vld [vmem:[#allocation9 + $0x68] sm:$0xff]
          %v812 = vld [vmem:[#allocation9 + $0x70] sm:$0xff]
          %v813 = vld [vmem:[#allocation9 + $0x78] sm:$0xff]
          %v814 = vld [vmem:[#allocation10] sm:$0xff]
          %v815 = vld [vmem:[#allocation10 + $0x8] sm:$0xff]
          %v816 = vld [vmem:[#allocation10 + $0x10] sm:$0xff]
          %v817 = vld [vmem:[#allocation10 + $0x18] sm:$0xff]
          %v818 = vld [vmem:[#allocation10 + $0x20] sm:$0xff]
          %v819 = vld [vmem:[#allocation10 + $0x28] sm:$0xff]
          %v820 = vld [vmem:[#allocation10 + $0x30] sm:$0xff]
          %v821 = vld [vmem:[#allocation10 + $0x38] sm:$0xff]
          %v822 = vld [vmem:[#allocation10 + $0x40] sm:$0xff]
          %v823 = vld [vmem:[#allocation10 + $0x48] sm:$0xff]
          %v824 = vld [vmem:[#allocation10 + $0x50] sm:$0xff]
          %v825 = vld [vmem:[#allocation10 + $0x58] sm:$0xff]
          %v826 = vld [vmem:[#allocation10 + $0x60] sm:$0xff]
          %v827 = vld [vmem:[#allocation10 + $0x68] sm:$0xff]
          %v828 = vld [vmem:[#allocation10 + $0x70] sm:$0xff]
          %v829 = vld [vmem:[#allocation10 + $0x78] sm:$0xff]
          %830 = vmatpush.msra.mxu0 %v829
          %831 = vmatpush.msra.mxu0 %v828
          %832 = vmatpush.msra.mxu0 %v827
          %833 = vmatpush.msra.mxu0 %v826
          %834 = vmatpush.msra.mxu0 %v825
          %835 = vmatpush.msra.mxu0 %v824
          %836 = vmatpush.msra.mxu0 %v823
          %837 = vmatpush.msra.mxu0 %v822
          %838 = vmatpush.msra.mxu0 %v821
          %839 = vmatpush.msra.mxu0 %v820
          %840 = vmatpush.msra.mxu0 %v819
          %841 = vmatpush.msra.mxu0 %v818
          %842 = vmatpush.msra.mxu0 %v817
          %843 = vmatpush.msra.mxu0 %v816
          %844 = vmatpush.msra.mxu0 %v815
          %845 = vmatpush.msra.mxu0 %v814
          %846 = vmatmul.f32.gmra.mxu0 %v766
          %v847 = vpop.f32.mrf.mxu0
          %v848 = vadd.f32 0.0, %v847
          %849 = vmatmul.f32.gmra.mxu0 %v767
          %v850 = vpop.f32.mrf.mxu0
          %v851 = vadd.f32 0.0, %v850
          %852 = vmatmul.f32.gmra.mxu0 %v768
          %v853 = vpop.f32.mrf.mxu0
          %v854 = vadd.f32 0.0, %v853
          %855 = vmatmul.f32.gmra.mxu0 %v769
          %v856 = vpop.f32.mrf.mxu0
          %v857 = vadd.f32 0.0, %v856
          %858 = vmatmul.f32.gmra.mxu0 %v770
          %v859 = vpop.f32.mrf.mxu0
          %v860 = vadd.f32 0.0, %v859
          %861 = vmatmul.f32.gmra.mxu0 %v771
          %v862 = vpop.f32.mrf.mxu0
          %v863 = vadd.f32 0.0, %v862
          %864 = vmatmul.f32.gmra.mxu0 %v772
          %v865 = vpop.f32.mrf.mxu0
          %v866 = vadd.f32 0.0, %v865
          %867 = vmatmul.f32.gmra.mxu0 %v773
          %v868 = vpop.f32.mrf.mxu0
          %v869 = vadd.f32 0.0, %v868
          %870 = vmatmul.f32.gmra.mxu0 %v774
          %v871 = vpop.f32.mrf.mxu0
          %v872 = vadd.f32 0.0, %v871
          %873 = vmatmul.f32.gmra.mxu0 %v775
          %v874 = vpop.f32.mrf.mxu0
          %v875 = vadd.f32 0.0, %v874
          %876 = vmatmul.f32.gmra.mxu0 %v776
          %v877 = vpop.f32.mrf.mxu0
          %v878 = vadd.f32 0.0, %v877
          %879 = vmatmul.f32.gmra.mxu0 %v777
          %v880 = vpop.f32.mrf.mxu0
          %v881 = vadd.f32 0.0, %v880
          %882 = vmatmul.f32.gmra.mxu0 %v778
          %v883 = vpop.f32.mrf.mxu0
          %v884 = vadd.f32 0.0, %v883
          %885 = vmatmul.f32.gmra.mxu0 %v779
          %v886 = vpop.f32.mrf.mxu0
          %v887 = vadd.f32 0.0, %v886
          %888 = vmatmul.f32.gmra.mxu0 %v780
          %v889 = vpop.f32.mrf.mxu0
          %v890 = vadd.f32 0.0, %v889
          %891 = vmatmul.f32.gmra.mxu0 %v781
          %v892 = vpop.f32.mrf.mxu0
          %v893 = vadd.f32 0.0, %v892
          %894 = vdwg.mxu0
          %895 = vmatpush.msra.mxu0 %v813
          %896 = vmatpush.msra.mxu0 %v812
          %897 = vmatpush.msra.mxu0 %v811
          %898 = vmatpush.msra.mxu0 %v810
          %899 = vmatpush.msra.mxu0 %v809
          %900 = vmatpush.msra.mxu0 %v808
          %901 = vmatpush.msra.mxu0 %v807
          %902 = vmatpush.msra.mxu0 %v806
          %903 = vmatpush.msra.mxu0 %v805
          %904 = vmatpush.msra.mxu0 %v804
          %905 = vmatpush.msra.mxu0 %v803
          %906 = vmatpush.msra.mxu0 %v802
          %907 = vmatpush.msra.mxu0 %v801
          %908 = vmatpush.msra.mxu0 %v800
          %909 = vmatpush.msra.mxu0 %v799
          %910 = vmatpush.msra.mxu0 %v798
          %911 = vmatmul.f32.gmra.mxu0 %v782
          %v912 = vpop.f32.mrf.mxu0
          %v913 = vadd.f32 %v848, %v912
          %914 = vmatmul.f32.gmra.mxu0 %v783
          %v915 = vpop.f32.mrf.mxu0
          %v916 = vadd.f32 %v851, %v915
          %917 = vmatmul.f32.gmra.mxu0 %v784
          %v918 = vpop.f32.mrf.mxu0
          %v919 = vadd.f32 %v854, %v918
          %920 = vmatmul.f32.gmra.mxu0 %v785
          %v921 = vpop.f32.mrf.mxu0
          %v922 = vadd.f32 %v857, %v921
          %923 = vmatmul.f32.gmra.mxu0 %v786
          %v924 = vpop.f32.mrf.mxu0
          %v925 = vadd.f32 %v860, %v924
          %926 = vmatmul.f32.gmra.mxu0 %v787
          %v927 = vpop.f32.mrf.mxu0
          %v928 = vadd.f32 %v863, %v927
          %929 = vmatmul.f32.gmra.mxu0 %v788
          %v930 = vpop.f32.mrf.mxu0
          %v931 = vadd.f32 %v866, %v930
          %932 = vmatmul.f32.gmra.mxu0 %v789
          %v933 = vpop.f32.mrf.mxu0
          %v934 = vadd.f32 %v869, %v933
          %935 = vmatmul.f32.gmra.mxu0 %v790
          %v936 = vpop.f32.mrf.mxu0
          %v937 = vadd.f32 %v872, %v936
          %938 = vmatmul.f32.gmra.mxu0 %v791
          %v939 = vpop.f32.mrf.mxu0
          %v940 = vadd.f32 %v875, %v939
          %941 = vmatmul.f32.gmra.mxu0 %v792
          %v942 = vpop.f32.mrf.mxu0
          %v943 = vadd.f32 %v878, %v942
          %944 = vmatmul.f32.gmra.mxu0 %v793
          %v945 = vpop.f32.mrf.mxu0
          %v946 = vadd.f32 %v881, %v945
          %947 = vmatmul.f32.gmra.mxu0 %v794
          %v948 = vpop.f32.mrf.mxu0
          %v949 = vadd.f32 %v884, %v948
          %950 = vmatmul.f32.gmra.mxu0 %v795
          %v951 = vpop.f32.mrf.mxu0
          %v952 = vadd.f32 %v887, %v951
          %953 = vmatmul.f32.gmra.mxu0 %v796
          %v954 = vpop.f32.mrf.mxu0
          %v955 = vadd.f32 %v890, %v954
          %956 = vmatmul.f32.gmra.mxu0 %v797
          %v957 = vpop.f32.mrf.mxu0
          %v958 = vadd.f32 %v893, %v957
          %959 = vdwg.mxu0
          %960 = vst [vmem:[%s350] sm:$0xff] %v913
          %961 = vst [vmem:[%s350 + $0x8] sm:$0xff] %v916
          %962 = vst [vmem:[%s350 + $0x10] sm:$0xff] %v919
          %963 = vst [vmem:[%s350 + $0x18] sm:$0xff] %v922
          %964 = vst [vmem:[%s350 + $0x20] sm:$0xff] %v925
          %965 = vst [vmem:[%s350 + $0x28] sm:$0xff] %v928
          %966 = vst [vmem:[%s350 + $0x30] sm:$0xff] %v931
          %967 = vst [vmem:[%s350 + $0x38] sm:$0xff] %v934
          %968 = vst [vmem:[%s350 + $0x40] sm:$0xff] %v937
          %969 = vst [vmem:[%s350 + $0x48] sm:$0xff] %v940
          %970 = vst [vmem:[%s350 + $0x50] sm:$0xff] %v943
          %971 = vst [vmem:[%s350 + $0x58] sm:$0xff] %v946
          %972 = vst [vmem:[%s350 + $0x60] sm:$0xff] %v949
          %973 = vst [vmem:[%s350 + $0x68] sm:$0xff] %v952
          %974 = vst [vmem:[%s350 + $0x70] sm:$0xff] %v955
          %975 = vst [vmem:[%s350 + $0x78] sm:$0xff] %v958
        $region68: #{tpu_custom_call.1} parent=39 // pred_fallthru
          _
        %s976 = sand.u32 %s161, 1
        %s977 = scalar_lea.sflag [#allocation5], %s976
        %s978 = sand.u32 %s161, 1
        %s979 = smul.addr %s978, 128
        %s980 = scalar_lea.vmem [#allocation12], %s979
        // Predicated region
        $region69: #{tpu_custom_call.1} parent=39 // pred_check
          %p981 = pneg %p171
        $region70: #{tpu_custom_call.1} parent=39 // pred_check_branch
          %983 = sbr.rel (%p981) target = $region72
        $region71: #{tpu_custom_call.1} parent=39 // pred_region
          %s984 = smul.u32 16, %s28
          %986 = vsyncadd %s977, 0
          %s987 = smul.addr %s984, 8
          %s988 = scalar_lea.hbm %s5, %s987
          %s989 = sshll.u32 %s980, 4
          %s990 = int_to_ptr.vmem [resolvable:$true] %s989
          %s991 = sshll.u32 %s988, 4
          %s992 = int_to_ptr.hbm [resolvable:$true] %s991
          %997 = dma.vmem_to_hbm [thread:$0]  %s990, 2048, %s992, %s977, 128, 128, 8
        $region72: #{tpu_custom_call.1} parent=39 // pred_fallthru
          _
      $region40: #{tpu_custom_call.1} parent=5 // pred_fallthru
        _
      %p998 = scmp.le.s32.totalorder 2, %s19
      // Predicated region
      $region73: #{tpu_custom_call.1} parent=5 // pred_check
        %p999 = pneg %p998
      $region74: #{tpu_custom_call.1} parent=5 // pred_check_branch
        %1001 = sbr.rel (%p999) target = $region76
      $region75: #{tpu_custom_call.1} parent=5 // pred_region
        %s1002 = ssub.s32 %s19, 2
        // Predicated region
        $region77: #{tpu_custom_call.1} parent=75 // pred_check
          %p1003 = pneg %p177
        $region78: #{tpu_custom_call.1} parent=75 // pred_check_branch
          %1005 = sbr.rel (%p1003) target = $region80
        $region79: #{tpu_custom_call.1} parent=75 // pred_region
          %s1006 = sand.u32 %s162, 1
          %s1007 = scalar_lea.sflag [#allocation5], %s1006
          %s1008 = sand.u32 %s162, 1
          %s1009 = smul.addr %s1008, 128
          %s1010 = scalar_lea.vmem [#allocation12], %s1009
          %1012 = dma.done %s1007, 2048
        $region80: #{tpu_custom_call.1} parent=75 // pred_fallthru
          _
      $region76: #{tpu_custom_call.1} parent=5 // pred_fallthru
        _
    $region6: #{tpu_custom_call.1} parent=1 // loop_footer
      %s23 = sadd.s32 1, %s19
    $region7: #{tpu_custom_call.1} parent=1 // loop_footer_branch
      %18 = sbr.rel target = $region3
    $region8: #{tpu_custom_call.1} parent=1 // loop_exit
      _
    %1013 = vsyncpa [#allocation4], 1
    %s1014 = scalar_lea.sflag [#allocation4], 1
    %1015 = vsyncpa %s1014, 1
    %1016 = vsyncpa [#allocation7], 1
    %1017 = vsyncpa [#allocation11], 1
    %1018 = vsyncpa [#allocation5], 1
    %s1019 = scalar_lea.sflag [#allocation5], 1
    %1020 = vsyncpa %s1019, 1

</llo_original>
